<compile_context>
chip_gen: v6e
topology: v6e:2x2x1
jax: 0.10.0
libtpu: 0.0.40
codegen_flags: <defaults>
</compile_context>

<pallas_src>
import numpy as np
import jax
import jax.numpy as jnp
from jax import lax
from jax.experimental import pallas as pl
from jax.experimental.pallas import tpu as pltpu


# ----------------------------------------------------------------------------
# Kernel 1: single-layer bidirectional LSTM
#   - hoisted input projection (one (n,E)x(E,4H) matmul per direction)
#   - interleaved fwd/bwd recurrence in one fori_loop
#   - single (n, 2H) output ref (fwd -> [:, :H], bwd -> [:, H:])
# ----------------------------------------------------------------------------
def bilstm_kernel(x_ref, wif_ref, whf_ref, bf_ref, wib_ref, whb_ref, bb_ref,
                  out_ref, xwf_ref, xwb_ref):
    n = x_ref.shape[0]
    H = whf_ref.shape[0]

    # Hoisted input-to-hidden projections for the whole sequence (MXU-friendly).
    x = x_ref[...]
    xwf_ref[...] = (jnp.dot(x, wif_ref[...], preferred_element_type=jnp.float32)
                    + bf_ref[...])
    xwb_ref[...] = (jnp.dot(x, wib_ref[...], preferred_element_type=jnp.float32)
                    + bb_ref[...])

    whf = whf_ref[...]
    whb = whb_ref[...]

    def cell(pre, h, c, w_hh):
        # pre = x_t @ W_ih + b (precomputed); only the unavoidable h @ W_hh here.
        gates = pre + jnp.dot(h, w_hh, preferred_element_type=jnp.float32)
        i = jax.nn.sigmoid(gates[:, 0:H])
        f = jax.nn.sigmoid(gates[:, H:2 * H])
        g = jnp.tanh(gates[:, 2 * H:3 * H])
        o = jax.nn.sigmoid(gates[:, 3 * H:4 * H])
        c_new = f * c + i * g
        h_new = o * jnp.tanh(c_new)
        return h_new, c_new

    def body(t, carry):
        hf, cf, hb, cb = carry
        tb = n - 1 - t
        pre_f = xwf_ref[pl.ds(t, 1), :]
        pre_b = xwb_ref[pl.ds(tb, 1), :]
        hf, cf = cell(pre_f, hf, cf, whf)
        hb, cb = cell(pre_b, hb, cb, whb)
        out_ref[pl.ds(t, 1), pl.ds(0, H)] = hf
        out_ref[pl.ds(tb, 1), pl.ds(H, H)] = hb
        return (hf, cf, hb, cb)

    z = jnp.zeros((1, H), jnp.float32)
    lax.fori_loop(0, n, body, (z, z, z, z))


def bilstm_layer(x, wif, whf, bf, wib, whb, bb):
    n = x.shape[0]
    H = whf.shape[0]
    vmem = pl.BlockSpec(memory_space=pltpu.MemorySpace.VMEM)
    # PyTorch bidirectional LSTM output = concat([fwd, bwd], -1), produced
    # directly in-kernel as a single (n, 2H) buffer.
    # TODO(synk): stacked layers could be fused into one pallas_call (hidden kept
    # in VMEM across layers); kept per-layer calls here for clarity.
    return pl.pallas_call(
        bilstm_kernel,
        out_shape=jax.ShapeDtypeStruct((n, 2 * H), jnp.float32),
        in_specs=[vmem] * 7,
        out_specs=vmem,
        scratch_shapes=[pltpu.VMEM((n, 4 * H), jnp.float32),
                        pltpu.VMEM((n, 4 * H), jnp.float32)],
    )(x, wif, whf, bf, wib, whb, bb)


# ----------------------------------------------------------------------------
# Kernel 2: factorized edge-scorer MLP over all (head, modifier) pairs
#   score[i, j] = w2 . tanh(h_i @ W1a + h_j @ W1b + b1) + b2
#   Row-tiled grid (parallel), lane-dense (TILE_I, n_col_pad) output blocks,
#   final contraction done on VPU + lane reduction (no N=1 MXU matmul).
# ----------------------------------------------------------------------------
def edge_scorer_kernel(ha_ref, hb_ref, w1a_ref, w1b_ref, b1_ref, w2_ref, b2_ref,
                       o_ref):
    a = jnp.dot(ha_ref[...], w1a_ref[...],
                preferred_element_type=jnp.float32)          # (TILE_I, mlp)
    b = jnp.dot(hb_ref[...], w1b_ref[...],
                preferred_element_type=jnp.float32)          # (n_col_pad, mlp)
    t3 = jnp.tanh(a[:, None, :] + b[None, :, :]
                  + b1_ref[...][None, :, :])                 # (TILE_I, n_col_pad, mlp)
    scores = jnp.sum(t3 * w2_ref[...][None, :, :], axis=-1)  # lane reduction
    o_ref[...] = scores + b2_ref[...]


def edge_scores(hidden, mlp_w1, mlp_b1, mlp_w2, mlp_b2):
    n, two_h = hidden.shape
    mlp = mlp_w1.shape[1]

    TILE_I = 8
    n_row_pad = ((n + TILE_I - 1) // TILE_I) * TILE_I
    n_col_pad = ((n + 127) // 128) * 128          # lane-dense score columns
    # Single padded hidden buffer serves both the row (A) and column (B) sides.
    hidden_pad = jnp.zeros((n_col_pad, two_h), jnp.float32).at[:n].set(hidden)

    w1a = mlp_w1[:two_h]                          # (2H, mlp)
    w1b = mlp_w1[two_h:]                          # (2H, mlp)
    w2_row = mlp_w2.T                             # (1, mlp)

    grid = (n_row_pad // TILE_I,)
    scores_pad = pl.pallas_call(
        edge_scorer_kernel,
        out_shape=jax.ShapeDtypeStruct((n_row_pad, n_col_pad), jnp.float32),
        grid=grid,
        in_specs=[
            pl.BlockSpec((TILE_I, two_h), lambda i: (i, 0)),      # head rows tile
            pl.BlockSpec((n_col_pad, two_h), lambda i: (0, 0)),   # all modifiers
            pl.BlockSpec((two_h, mlp), lambda i: (0, 0)),         # W1a
            pl.BlockSpec((two_h, mlp), lambda i: (0, 0)),         # W1b
            pl.BlockSpec((1, mlp), lambda i: (0, 0)),             # b1
            pl.BlockSpec((1, mlp), lambda i: (0, 0)),             # w2 (row)
            pl.BlockSpec((1, 1), lambda i: (0, 0)),               # b2
        ],
        out_specs=pl.BlockSpec((TILE_I, n_col_pad), lambda i: (i, 0)),
        compiler_params=pltpu.CompilerParams(
            dimension_semantics=("parallel",),
            vmem_limit_bytes=32 * 1024 * 1024),
    )(hidden_pad, hidden_pad, w1a, w1b, mlp_b1, w2_row, mlp_b2)

    return scores_pad[:n, :n]


# ----------------------------------------------------------------------------
# Forward pass (mirrors DependencyParser.forward)
# ----------------------------------------------------------------------------
def forward(sentence, params):
    word_idx_tensor, pos_idx_tensor, true_sentence_len = sentence
    word_idx = word_idx_tensor[0][:true_sentence_len]
    pos_idx = pos_idx_tensor[0][:true_sentence_len]

    # embeddings (gather glue)
    word_vec = jnp.take(params["word_emb"], word_idx, axis=0)
    pos_vec = jnp.take(params["pos_emb"], pos_idx, axis=0)
    x = jnp.concatenate([word_vec, pos_vec], axis=1)          # (n, E)

    # encoder: stacked BiLSTM (each layer is one Pallas kernel call)
    hidden = x
    for layer in params["lstm"]:
        hidden = bilstm_layer(hidden, *layer)                  # (n, 2H)

    # edge scorer: score[i, j] = MLP([h_i, h_j]) without materializing (n^2, 4H)
    score_matrix = edge_scores(hidden, params["mlp_w1"], params["mlp_b1"],
                               params["mlp_w2"], params["mlp_b2"])

    # TODO(synk): decode_mst (Chu-Liu-Edmonds) is host-side numpy in the original;
    # replaced here with a greedy per-modifier argmax head decoder.
    s = np.array(jax.device_get(score_matrix), dtype=np.float64)
    np.fill_diagonal(s, -np.inf)
    predicted_tree = np.argmax(s, axis=0)
    predicted_tree[0] = 0

    return score_matrix, predicted_tree


# ----------------------------------------------------------------------------
# Deterministic parameter construction
# ----------------------------------------------------------------------------
def make_params(key, word_vocab, word_emb_dim, pos_vocab, pos_emb_dim,
                hidden_dim, mlp_hidden_dim, num_layers):
    ks = iter(jax.random.split(key, 64))

    def rnd(shape, scale=0.1):
        return (scale * jax.random.normal(next(ks), shape)).astype(jnp.float32)

    params = {
        "word_emb": rnd((word_vocab, word_emb_dim)),
        "pos_emb": rnd((pos_vocab, pos_emb_dim)),
    }

    lstm_layers = []
    in_dim = word_emb_dim + pos_emb_dim
    for _ in range(num_layers):
        layer = (
            rnd((in_dim, 4 * hidden_dim)),       # w_ih fwd
            rnd((hidden_dim, 4 * hidden_dim)),   # w_hh fwd
            rnd((1, 4 * hidden_dim)),            # bias fwd (= b_ih + b_hh)
            rnd((in_dim, 4 * hidden_dim)),       # w_ih bwd
            rnd((hidden_dim, 4 * hidden_dim)),   # w_hh bwd
            rnd((1, 4 * hidden_dim)),            # bias bwd
        )
        lstm_layers.append(layer)
        in_dim = 2 * hidden_dim
    params["lstm"] = lstm_layers

    params["mlp_w1"] = rnd((4 * hidden_dim, mlp_hidden_dim))
    params["mlp_b1"] = rnd((1, mlp_hidden_dim))
    params["mlp_w2"] = rnd((mlp_hidden_dim, 1))
    params["mlp_b2"] = rnd((1, 1))
    return params


if __name__ == "__main__":
    key = jax.random.PRNGKey(0)
    k_param, k_word, k_pos = jax.random.split(key, 3)

    word_vocab, pos_vocab = 50, 20
    word_emb_dim, pos_emb_dim = 16, 16
    hidden_dim, mlp_hidden_dim, num_layers = 32, 64, 2
    seq_len = 8

    params = make_params(k_param, word_vocab, word_emb_dim, pos_vocab,
                         pos_emb_dim, hidden_dim, mlp_hidden_dim, num_layers)

    word_idx_tensor = jax.random.randint(k_word, (1, seq_len), 0, word_vocab)
    pos_idx_tensor = jax.random.randint(k_pos, (1, seq_len), 0, pos_vocab)
    sentence = (word_idx_tensor, pos_idx_tensor, seq_len)

    score_matrix, predicted_tree = forward(sentence, params)
    jax.block_until_ready(score_matrix)

    assert score_matrix.shape == (seq_len, seq_len)
    assert predicted_tree.shape == (seq_len,)
    assert bool(jnp.all(jnp.isfinite(score_matrix)))
    print("KERNEL_OK")
</pallas_src>

<mosaic_0001>
module attributes {stable_mosaic.version = 11 : i64} {
  func.func @bilstm_kernel(%arg0: memref<8x32xf32, #tpu.memory_space<vmem>>, %arg1: memref<32x128xf32, #tpu.memory_space<vmem>>, %arg2: memref<32x128xf32, #tpu.memory_space<vmem>>, %arg3: memref<1x128xf32, #tpu.memory_space<vmem>>, %arg4: memref<32x128xf32, #tpu.memory_space<vmem>>, %arg5: memref<32x128xf32, #tpu.memory_space<vmem>>, %arg6: memref<1x128xf32, #tpu.memory_space<vmem>>, %arg7: memref<8x64xf32, #tpu.memory_space<vmem>>, %arg8: memref<8x128xf32, #tpu.memory_space<vmem>>, %arg9: memref<8x128xf32, #tpu.memory_space<vmem>>) attributes {dimension_semantics = [], scalar_prefetch = 0 : i64, scratch_operands = 2 : i64, tpu.core_type = #tpu.core_type<tc>} {
    %c0 = arith.constant 0 : index
    %c0_0 = arith.constant 0 : index
    %0 = vector.load %arg0[%c0, %c0_0] : memref<8x32xf32, #tpu.memory_space<vmem>>, vector<8x32xf32>
    %c0_1 = arith.constant 0 : index
    %c0_2 = arith.constant 0 : index
    %1 = vector.load %arg1[%c0_1, %c0_2] : memref<32x128xf32, #tpu.memory_space<vmem>>, vector<32x128xf32>
    %cst = arith.constant dense<0.000000e+00> : vector<8x128xf32>
    %2 = tpu.matmul %0, %1, %cst {dimension_numbers = #tpu.dot_dimension_numbers<[1], [0], [0], [1], [0, 0, 1, 1], [], []>} : vector<8x32xf32>, vector<32x128xf32>, vector<8x128xf32> -> vector<8x128xf32>
    %c0_3 = arith.constant 0 : index
    %c0_4 = arith.constant 0 : index
    %3 = vector.load %arg3[%c0_3, %c0_4] : memref<1x128xf32, #tpu.memory_space<vmem>>, vector<1x128xf32>
    %4 = vector.broadcast %3 : vector<1x128xf32> to vector<8x128xf32>
    %5 = arith.addf %2, %4 : vector<8x128xf32>
    %c0_5 = arith.constant 0 : index
    %c0_6 = arith.constant 0 : index
    %6 = vector.load %arg8[%c0_5, %c0_6] : memref<8x128xf32, #tpu.memory_space<vmem>>, vector<8x128xf32>
    tpu.vector_store %arg8[%c0_5, %c0_6], %5 {strides = array<i32>} : memref<8x128xf32, #tpu.memory_space<vmem>>, vector<8x128xf32>,
    %c0_7 = arith.constant 0 : index
    %c0_8 = arith.constant 0 : index
    %7 = vector.load %arg4[%c0_7, %c0_8] : memref<32x128xf32, #tpu.memory_space<vmem>>, vector<32x128xf32>
    %cst_9 = arith.constant dense<0.000000e+00> : vector<8x128xf32>
    %8 = tpu.matmul %0, %7, %cst_9 {dimension_numbers = #tpu.dot_dimension_numbers<[1], [0], [0], [1], [0, 0, 1, 1], [], []>} : vector<8x32xf32>, vector<32x128xf32>, vector<8x128xf32> -> vector<8x128xf32>
    %c0_10 = arith.constant 0 : index
    %c0_11 = arith.constant 0 : index
    %9 = vector.load %arg6[%c0_10, %c0_11] : memref<1x128xf32, #tpu.memory_space<vmem>>, vector<1x128xf32>
    %10 = vector.broadcast %9 : vector<1x128xf32> to vector<8x128xf32>
    %11 = arith.addf %8, %10 : vector<8x128xf32>
    %c0_12 = arith.constant 0 : index
    %c0_13 = arith.constant 0 : index
    %12 = vector.load %arg9[%c0_12, %c0_13] : memref<8x128xf32, #tpu.memory_space<vmem>>, vector<8x128xf32>
    tpu.vector_store %arg9[%c0_12, %c0_13], %11 {strides = array<i32>} : memref<8x128xf32, #tpu.memory_space<vmem>>, vector<8x128xf32>,
    %c0_14 = arith.constant 0 : index
    %c0_15 = arith.constant 0 : index
    %13 = vector.load %arg2[%c0_14, %c0_15] : memref<32x128xf32, #tpu.memory_space<vmem>>, vector<32x128xf32>
    %c0_16 = arith.constant 0 : index
    %c0_17 = arith.constant 0 : index
    %14 = vector.load %arg5[%c0_16, %c0_17] : memref<32x128xf32, #tpu.memory_space<vmem>>, vector<32x128xf32>
    %cst_18 = arith.constant 0.000000e+00 : f32
    %15 = vector.broadcast %cst_18 : f32 to vector<1x32xf32>
    %c0_i32 = arith.constant 0 : i32
    %c8_i32 = arith.constant 8 : i32
    %16 = arith.addi %c0_i32, %c8_i32 : i32
    %c1_i32 = arith.constant 1 : i32
    %17:4 = scf.for %arg10 = %c0_i32 to %16 step %c1_i32 iter_args(%arg11 = %15, %arg12 = %15, %arg13 = %15, %arg14 = %15) -> (vector<1x32xf32>, vector<1x32xf32>, vector<1x32xf32>, vector<1x32xf32>)  : i32 {
      %c7_i32 = arith.constant 7 : i32
      %18 = arith.subi %c7_i32, %arg10 : i32
      %19 = arith.index_cast %arg10 : i32 to index
      %c0_20 = arith.constant 0 : index
      %20 = vector.load %arg8[%19, %c0_20] : memref<8x128xf32, #tpu.memory_space<vmem>>, vector<1x128xf32>
      %21 = arith.index_cast %18 : i32 to index
      %c0_21 = arith.constant 0 : index
      %22 = vector.load %arg9[%21, %c0_21] : memref<8x128xf32, #tpu.memory_space<vmem>>, vector<1x128xf32>
      %cst_22 = arith.constant dense<0.000000e+00> : vector<1x128xf32>
      %23 = tpu.matmul %arg11, %13, %cst_22 {dimension_numbers = #tpu.dot_dimension_numbers<[1], [0], [0], [1], [0, 0, 1, 1], [], []>} : vector<1x32xf32>, vector<32x128xf32>, vector<1x128xf32> -> vector<1x128xf32>
      %24 = arith.addf %20, %23 : vector<1x128xf32>
      %25 = vector.extract_strided_slice %24 {offsets = [0, 0], sizes = [1, 32], strides = [1, 1]} : vector<1x128xf32> to vector<1x32xf32>
      %26 = arith.negf %25 : vector<1x32xf32>
      %27 = math.exp %26 : vector<1x32xf32>
      %cst_23 = arith.constant 1.000000e+00 : f32
      %28 = vector.broadcast %cst_23 : f32 to vector<1x32xf32>
      %29 = arith.addf %28, %27 : vector<1x32xf32>
      %30 = arith.divf %28, %29 : vector<1x32xf32>
      %31 = vector.extract_strided_slice %24 {offsets = [0, 32], sizes = [1, 32], strides = [1, 1]} : vector<1x128xf32> to vector<1x32xf32>
      %32 = arith.negf %31 : vector<1x32xf32>
      %33 = math.exp %32 : vector<1x32xf32>
      %cst_24 = arith.constant 1.000000e+00 : f32
      %34 = vector.broadcast %cst_24 : f32 to vector<1x32xf32>
      %35 = arith.addf %34, %33 : vector<1x32xf32>
      %36 = arith.divf %34, %35 : vector<1x32xf32>
      %37 = vector.extract_strided_slice %24 {offsets = [0, 64], sizes = [1, 32], strides = [1, 1]} : vector<1x128xf32> to vector<1x32xf32>
      %38 = math.tanh %37 : vector<1x32xf32>
      %39 = vector.extract_strided_slice %24 {offsets = [0, 96], sizes = [1, 32], strides = [1, 1]} : vector<1x128xf32> to vector<1x32xf32>
      %40 = arith.negf %39 : vector<1x32xf32>
      %41 = math.exp %40 : vector<1x32xf32>
      %cst_25 = arith.constant 1.000000e+00 : f32
      %42 = vector.broadcast %cst_25 : f32 to vector<1x32xf32>
      %43 = arith.addf %42, %41 : vector<1x32xf32>
      %44 = arith.divf %42, %43 : vector<1x32xf32>
      %45 = arith.mulf %36, %arg12 : vector<1x32xf32>
      %46 = arith.mulf %30, %38 : vector<1x32xf32>
      %47 = arith.addf %45, %46 : vector<1x32xf32>
      %48 = math.tanh %47 : vector<1x32xf32>
      %49 = arith.mulf %44, %48 : vector<1x32xf32>
      %cst_26 = arith.constant dense<0.000000e+00> : vector<1x128xf32>
      %50 = tpu.matmul %arg13, %14, %cst_26 {dimension_numbers = #tpu.dot_dimension_numbers<[1], [0], [0], [1], [0, 0, 1, 1], [], []>} : vector<1x32xf32>, vector<32x128xf32>, vector<1x128xf32> -> vector<1x128xf32>
      %51 = arith.addf %22, %50 : vector<1x128xf32>
      %52 = vector.extract_strided_slice %51 {offsets = [0, 0], sizes = [1, 32], strides = [1, 1]} : vector<1x128xf32> to vector<1x32xf32>
      %53 = arith.negf %52 : vector<1x32xf32>
      %54 = math.exp %53 : vector<1x32xf32>
      %cst_27 = arith.constant 1.000000e+00 : f32
      %55 = vector.broadcast %cst_27 : f32 to vector<1x32xf32>
      %56 = arith.addf %55, %54 : vector<1x32xf32>
      %57 = arith.divf %55, %56 : vector<1x32xf32>
      %58 = vector.extract_strided_slice %51 {offsets = [0, 32], sizes = [1, 32], strides = [1, 1]} : vector<1x128xf32> to vector<1x32xf32>
      %59 = arith.negf %58 : vector<1x32xf32>
      %60 = math.exp %59 : vector<1x32xf32>
      %cst_28 = arith.constant 1.000000e+00 : f32
      %61 = vector.broadcast %cst_28 : f32 to vector<1x32xf32>
      %62 = arith.addf %61, %60 : vector<1x32xf32>
      %63 = arith.divf %61, %62 : vector<1x32xf32>
      %64 = vector.extract_strided_slice %51 {offsets = [0, 64], sizes = [1, 32], strides = [1, 1]} : vector<1x128xf32> to vector<1x32xf32>
      %65 = math.tanh %64 : vector<1x32xf32>
      %66 = vector.extract_strided_slice %51 {offsets = [0, 96], sizes = [1, 32], strides = [1, 1]} : vector<1x128xf32> to vector<1x32xf32>
      %67 = arith.negf %66 : vector<1x32xf32>
      %68 = math.exp %67 : vector<1x32xf32>
      %cst_29 = arith.constant 1.000000e+00 : f32
      %69 = vector.broadcast %cst_29 : f32 to vector<1x32xf32>
      %70 = arith.addf %69, %68 : vector<1x32xf32>
      %71 = arith.divf %69, %70 : vector<1x32xf32>
      %72 = arith.mulf %63, %arg14 : vector<1x32xf32>
      %73 = arith.mulf %57, %65 : vector<1x32xf32>
      %74 = arith.addf %72, %73 : vector<1x32xf32>
      %75 = math.tanh %74 : vector<1x32xf32>
      %76 = arith.mulf %71, %75 : vector<1x32xf32>
      %77 = arith.index_cast %arg10 : i32 to index
      %c0_30 = arith.constant 0 : index
      %78 = vector.load %arg7[%77, %c0_30] : memref<8x64xf32, #tpu.memory_space<vmem>>, vector<1x32xf32>
      tpu.vector_store %arg7[%77, %c0_30], %49 {strides = array<i32>} : memref<8x64xf32, #tpu.memory_space<vmem>>, vector<1x32xf32>,
      %79 = arith.index_cast %18 : i32 to index
      %c32 = arith.constant 32 : index
      %80 = vector.load %arg7[%79, %c32] : memref<8x64xf32, #tpu.memory_space<vmem>>, vector<1x32xf32>
      tpu.vector_store %arg7[%79, %c32], %76 {strides = array<i32>} : memref<8x64xf32, #tpu.memory_space<vmem>>, vector<1x32xf32>,
      scf.yield %49, %47, %76, %74 : vector<1x32xf32>, vector<1x32xf32>, vector<1x32xf32>, vector<1x32xf32>
    }
    %c8_i32_19 = arith.constant 8 : i32
    return
  }
}

</mosaic_0001>

<llo_original>
// kernel: tpu_custom_call.1
$region0: #{tpu_custom_call.1}
  #allocation0 [shape = 'u32[]', space=smem, size = 0x4, offset = 0x4, fixed_abs, tag = 'smem constant byte address 0x4 - core index']
  #allocation1 [shape = 'u32[144,128]{1,0:T(1,128)}', space=vmem, size = 0x12000, scoped, tag = 'internal scratch']
  #allocation2 [shape = 'f32[8,128]{1,0:T(8,128)}', space=vmem, size = 0x1000, scoped, tag = 'scratch operand']
  #allocation3 [shape = 'f32[8,128]{1,0:T(8,128)}', space=vmem, size = 0x1000, scoped, tag = 'scratch operand']
  %s0 = inlined_call_operand.hbm [shape: f32[8,32], index: 0, kind: input, shape index: {}]
  %s1 = inlined_call_operand.hbm [shape: f32[32,128], index: 1, kind: input, shape index: {}]
  %s2 = inlined_call_operand.hbm [shape: f32[32,128], index: 2, kind: input, shape index: {}]
  %s3 = inlined_call_operand.vmem [shape: f32[1,128], index: 3, kind: input, shape index: {}]
  %s4 = inlined_call_operand.hbm [shape: f32[32,128], index: 4, kind: input, shape index: {}]
  %s5 = inlined_call_operand.hbm [shape: f32[32,128], index: 5, kind: input, shape index: {}]
  %s6 = inlined_call_operand.vmem [shape: f32[1,128], index: 6, kind: input, shape index: {}]
  %s7 = inlined_call_operand.hbm [shape: f32[8,64], index: 7, kind: output, shape index: {}]
  %s8 = sld [smem:[#allocation0]]
  $region65: #{tpu_custom_call.1} parent=0
    _
  %s10 = ssub.s32 1, %s8
  %s11 = scalar_select 0, %s10, %s8
  $region1: #{tpu_custom_call.1} parent=0
    #allocation4 [shape = 'u8[4096]{0}', space=vmem, size = 0x1000, scoped, tag = 'input window, operand 0, single buffered']
    #allocation5 [shape = 's32[1]{0}', space=sflag, size = 0x4, scoped, tag = 'scoped memory for tpu_custom_call.1']
    #allocation6 [shape = 's32[1]{0}', space=sflag, size = 0x4, scoped, tag = 'scoped memory for tpu_custom_call.1']
    #allocation7 [shape = 'u8[16384]{0}', space=vmem, size = 0x4000, scoped, tag = 'input window, operand 1, single buffered']
    #allocation8 [shape = 's32[1]{0}', space=sflag, size = 0x4, scoped, tag = 'scoped memory for tpu_custom_call.1']
    #allocation9 [shape = 'u8[16384]{0}', space=vmem, size = 0x4000, scoped, tag = 'input window, operand 2, single buffered']
    #allocation10 [shape = 'u8[16384]{0}', space=vmem, size = 0x4000, scoped, tag = 'input window, operand 4, single buffered']
    #allocation11 [shape = 's32[1]{0}', space=sflag, size = 0x4, scoped, tag = 'scoped memory for tpu_custom_call.1']
    #allocation12 [shape = 'u8[16384]{0}', space=vmem, size = 0x4000, scoped, tag = 'input window, operand 5, single buffered']
    #allocation13 [shape = 'u8[4096]{0}', space=vmem, size = 0x1000, scoped, tag = 'output window, operand 0, single buffered']
    %12 = vsyncpa [#allocation5], 0
    %13 = vsyncpa [#allocation8], 0
    %14 = vsyncpa [#allocation11], 0
    %15 = vsyncpa [#allocation6], 0
    // Predicated region
    $region2: #{tpu_custom_call.1} parent=1 // pred_check
      _
    $region3: #{tpu_custom_call.1} parent=1 // pred_check_branch
      %17 = sbr.rel (0) target = $region5
    $region4: #{tpu_custom_call.1} parent=1 // pred_region
      %s19 = ssub.s32 128, 128
      %20 = vsyncadd [#allocation5], %s19
      %s22 = sshll.u32 [#allocation4], 4
      %s23 = int_to_ptr.vmem [resolvable:$true] %s22
      %25 = dma.hbm_to_vmem [thread:$0]  %s0, 128, %s23, [#allocation5]
    $region5: #{tpu_custom_call.1} parent=1 // pred_fallthru
      _
    // Predicated region
    $region6: #{tpu_custom_call.1} parent=1 // pred_check
      _
    $region7: #{tpu_custom_call.1} parent=1 // pred_check_branch
      %27 = sbr.rel (0) target = $region9
    $region8: #{tpu_custom_call.1} parent=1 // pred_region
      %s29 = ssub.s32 512, 512
      %30 = vsyncadd [#allocation8], %s29
      %s31 = sshll.u32 [#allocation7], 4
      %s32 = int_to_ptr.vmem [resolvable:$true] %s31
      %37 = dma.hbm_to_vmem [thread:$0]  %s1, 512, %s32, [#allocation8], 128, 128, 8
    $region9: #{tpu_custom_call.1} parent=1 // pred_fallthru
      _
    // Predicated region
    $region10: #{tpu_custom_call.1} parent=1 // pred_check
      _
    $region11: #{tpu_custom_call.1} parent=1 // pred_check_branch
      %39 = sbr.rel (0) target = $region13
    $region12: #{tpu_custom_call.1} parent=1 // pred_region
      %s41 = ssub.s32 512, 512
      %42 = vsyncadd [#allocation8], %s41
      %s43 = sshll.u32 [#allocation9], 4
      %s44 = int_to_ptr.vmem [resolvable:$true] %s43
      %49 = dma.hbm_to_vmem [thread:$0]  %s2, 512, %s44, [#allocation8], 128, 128, 8
    $region13: #{tpu_custom_call.1} parent=1 // pred_fallthru
      _
    // Predicated region
    $region14: #{tpu_custom_call.1} parent=1 // pred_check
      _
    $region15: #{tpu_custom_call.1} parent=1 // pred_check_branch
      %51 = sbr.rel (0) target = $region17
    $region16: #{tpu_custom_call.1} parent=1 // pred_region
      _
    $region17: #{tpu_custom_call.1} parent=1 // pred_fallthru
      _
    // Predicated region
    $region18: #{tpu_custom_call.1} parent=1 // pred_check
      _
    $region19: #{tpu_custom_call.1} parent=1 // pred_check_branch
      %53 = sbr.rel (0) target = $region21
    $region20: #{tpu_custom_call.1} parent=1 // pred_region
      %s55 = ssub.s32 512, 512
      %56 = vsyncadd [#allocation11], %s55
      %s57 = sshll.u32 [#allocation10], 4
      %s58 = int_to_ptr.vmem [resolvable:$true] %s57
      %63 = dma.hbm_to_vmem [thread:$0]  %s4, 512, %s58, [#allocation11], 128, 128, 8
    $region21: #{tpu_custom_call.1} parent=1 // pred_fallthru
      _
    // Predicated region
    $region22: #{tpu_custom_call.1} parent=1 // pred_check
      _
    $region23: #{tpu_custom_call.1} parent=1 // pred_check_branch
      %65 = sbr.rel (0) target = $region25
    $region24: #{tpu_custom_call.1} parent=1 // pred_region
      %s67 = ssub.s32 512, 512
      %68 = vsyncadd [#allocation11], %s67
      %s69 = sshll.u32 [#allocation12], 4
      %s70 = int_to_ptr.vmem [resolvable:$true] %s69
      %75 = dma.hbm_to_vmem [thread:$0]  %s5, 512, %s70, [#allocation11], 128, 128, 8
    $region25: #{tpu_custom_call.1} parent=1 // pred_fallthru
      _
    // Predicated region
    $region26: #{tpu_custom_call.1} parent=1 // pred_check
      _
    $region27: #{tpu_custom_call.1} parent=1 // pred_check_branch
      %77 = sbr.rel (0) target = $region29
    $region28: #{tpu_custom_call.1} parent=1 // pred_region
      _
    $region29: #{tpu_custom_call.1} parent=1 // pred_fallthru
      _
    // Predicated region
    $region30: #{tpu_custom_call.1} parent=1 // pred_check
      _
    $region31: #{tpu_custom_call.1} parent=1 // pred_check_branch
      %79 = sbr.rel (0) target = $region33
    $region32: #{tpu_custom_call.1} parent=1 // pred_region
      %80 = dma.done [#allocation5], 128
    $region33: #{tpu_custom_call.1} parent=1 // pred_fallthru
      _
    // Predicated region
    $region34: #{tpu_custom_call.1} parent=1 // pred_check
      _
    $region35: #{tpu_custom_call.1} parent=1 // pred_check_branch
      %82 = sbr.rel (0) target = $region37
    $region36: #{tpu_custom_call.1} parent=1 // pred_region
      %83 = dma.done [#allocation8], 512
    $region37: #{tpu_custom_call.1} parent=1 // pred_fallthru
      _
    // Predicated region
    $region38: #{tpu_custom_call.1} parent=1 // pred_check
      _
    $region39: #{tpu_custom_call.1} parent=1 // pred_check_branch
      %85 = sbr.rel (0) target = $region41
    $region40: #{tpu_custom_call.1} parent=1 // pred_region
      %86 = dma.done [#allocation8], 512
    $region41: #{tpu_custom_call.1} parent=1 // pred_fallthru
      _
    // Predicated region
    $region42: #{tpu_custom_call.1} parent=1 // pred_check
      _
    $region43: #{tpu_custom_call.1} parent=1 // pred_check_branch
      %88 = sbr.rel (0) target = $region45
    $region44: #{tpu_custom_call.1} parent=1 // pred_region
      %89 = dma.done [#allocation11], 512
    $region45: #{tpu_custom_call.1} parent=1 // pred_fallthru
      _
    // Predicated region
    $region46: #{tpu_custom_call.1} parent=1 // pred_check
      _
    $region47: #{tpu_custom_call.1} parent=1 // pred_check_branch
      %91 = sbr.rel (0) target = $region49
    $region48: #{tpu_custom_call.1} parent=1 // pred_region
      %92 = dma.done [#allocation11], 512
    $region49: #{tpu_custom_call.1} parent=1 // pred_fallthru
      _
    %v93 = vld [vmem:[#allocation4] sm:$0xff]
    %v94 = vld [vmem:[#allocation7] sm:$0xff]
    %v95 = vld [vmem:[#allocation7 + $0x8] sm:$0xff]
    %v96 = vld [vmem:[#allocation7 + $0x10] sm:$0xff]
    %v97 = vld [vmem:[#allocation7 + $0x18] sm:$0xff]
    %v98 = vld [vmem:[%s3] sm:$0x1]
    %v100 = vlaneseq
    %v101 = vshrl.u32 %v100, 7
    %v102 = vsub.s32 0, %v101
    %v103 = vrot.slane %v98, %v102
    %vm105 = vcmask 261120
    %v107 = vsel %vm105, %v93, 0
    %109 = vmatprep.subr.mxu0 0.0
    %110 = vmatpush1.msra.mxu0 0.0
    %111 = vmatprep.subr.mxu0 0.0
    %112 = vmatpush1.msra.mxu0 0.0
    %113 = vmatprep.subr.mxu0 0.0
    %114 = vmatpush1.msra.mxu0 0.0
    %115 = vmatprep.subr.mxu0 0.0
    %116 = vmatpush1.msra.mxu0 0.0
    %117 = vmatprep.subr.mxu0 0.0
    %118 = vmatpush1.msra.mxu0 0.0
    %119 = vmatprep.subr.mxu0 0.0
    %120 = vmatpush1.msra.mxu0 0.0
    %121 = vmatprep.subr.mxu0 0.0
    %122 = vmatpush1.msra.mxu0 0.0
    %123 = vmatprep.subr.mxu0 0.0
    %124 = vmatpush1.msra.mxu0 0.0
    %125 = vmatprep.subr.mxu0 0.0
    %126 = vmatpush1.msra.mxu0 0.0
    %127 = vmatprep.subr.mxu0 0.0
    %128 = vmatpush1.msra.mxu0 0.0
    %129 = vmatprep.subr.mxu0 0.0
    %130 = vmatpush1.msra.mxu0 0.0
    %131 = vmatprep.subr.mxu0 0.0
    %132 = vmatpush1.msra.mxu0 0.0
    %133 = vmatprep.subr.mxu0 0.0
    %134 = vmatpush1.msra.mxu0 %v97
    %135 = vmatprep.subr.mxu0 0.0
    %136 = vmatpush1.msra.mxu0 %v96
    %137 = vmatprep.subr.mxu0 0.0
    %138 = vmatpush1.msra.mxu0 %v95
    %139 = vmatprep.subr.mxu0 0.0
    %140 = vmatpush1.msra.mxu0 %v94
    %141 = vmatprep.subr.mxu0 0.0
    %142 = vmatpush2.msra.mxu0 0.0
    %143 = vmatprep.subr.mxu0 0.0
    %144 = vmatpush2.msra.mxu0 0.0
    %145 = vmatprep.subr.mxu0 0.0
    %146 = vmatpush2.msra.mxu0 0.0
    %147 = vmatprep.subr.mxu0 0.0
    %148 = vmatpush2.msra.mxu0 0.0
    %149 = vmatprep.subr.mxu0 0.0
    %150 = vmatpush2.msra.mxu0 0.0
    %151 = vmatprep.subr.mxu0 0.0
    %152 = vmatpush2.msra.mxu0 0.0
    %153 = vmatprep.subr.mxu0 0.0
    %154 = vmatpush2.msra.mxu0 0.0
    %155 = vmatprep.subr.mxu0 0.0
    %156 = vmatpush2.msra.mxu0 0.0
    %157 = vmatprep.subr.mxu0 0.0
    %158 = vmatpush2.msra.mxu0 0.0
    %159 = vmatprep.subr.mxu0 0.0
    %160 = vmatpush2.msra.mxu0 0.0
    %161 = vmatprep.subr.mxu0 0.0
    %162 = vmatpush2.msra.mxu0 0.0
    %163 = vmatprep.subr.mxu0 0.0
    %164 = vmatpush2.msra.mxu0 0.0
    %165 = vmatprep.subr.mxu0 0.0
    %166 = vmatpush2.msra.mxu0 0.0
    %167 = vmatprep.subr.mxu0 0.0
    %168 = vmatpush2.msra.mxu0 0.0
    %169 = vmatprep.subr.mxu0 0.0
    %170 = vmatpush2.msra.mxu0 0.0
    %171 = vmatprep.subr.mxu0 0.0
    %172 = vmatpush2.msra.mxu0 0.0
    %173 = vmatprep.mubr.f32.mxu0 0.0
    %174 = vmatmul.mubr.f32.gmra.mxu0 %v107
    %v175 = vpop.f32.mrf.mxu0
    %v176 = vadd.f32 %v103, %v175
    %v177 = vpop.f32.mrf.mxu0
    %178 = vdwg.mxu0
    %179 = vst [vmem:[#allocation2] sm:$0xff] %v176
    %v180 = vld [vmem:[#allocation10] sm:$0xff]
    %v181 = vld [vmem:[#allocation10 + $0x8] sm:$0xff]
    %v182 = vld [vmem:[#allocation10 + $0x10] sm:$0xff]
    %v183 = vld [vmem:[#allocation10 + $0x18] sm:$0xff]
    %v184 = vld [vmem:[%s6] sm:$0x1]
    %v186 = vlaneseq
    %v187 = vshrl.u32 %v186, 7
    %v188 = vsub.s32 0, %v187
    %v189 = vrot.slane %v184, %v188
    %191 = vmatprep.subr.mxu0 0.0
    %192 = vmatpush1.msra.mxu0 0.0
    %193 = vmatprep.subr.mxu0 0.0
    %194 = vmatpush1.msra.mxu0 0.0
    %195 = vmatprep.subr.mxu0 0.0
    %196 = vmatpush1.msra.mxu0 0.0
    %197 = vmatprep.subr.mxu0 0.0
    %198 = vmatpush1.msra.mxu0 0.0
    %199 = vmatprep.subr.mxu0 0.0
    %200 = vmatpush1.msra.mxu0 0.0
    %201 = vmatprep.subr.mxu0 0.0
    %202 = vmatpush1.msra.mxu0 0.0
    %203 = vmatprep.subr.mxu0 0.0
    %204 = vmatpush1.msra.mxu0 0.0
    %205 = vmatprep.subr.mxu0 0.0
    %206 = vmatpush1.msra.mxu0 0.0
    %207 = vmatprep.subr.mxu0 0.0
    %208 = vmatpush1.msra.mxu0 0.0
    %209 = vmatprep.subr.mxu0 0.0
    %210 = vmatpush1.msra.mxu0 0.0
    %211 = vmatprep.subr.mxu0 0.0
    %212 = vmatpush1.msra.mxu0 0.0
    %213 = vmatprep.subr.mxu0 0.0
    %214 = vmatpush1.msra.mxu0 0.0
    %215 = vmatprep.subr.mxu0 0.0
    %216 = vmatpush1.msra.mxu0 %v183
    %217 = vmatprep.subr.mxu0 0.0
    %218 = vmatpush1.msra.mxu0 %v182
    %219 = vmatprep.subr.mxu0 0.0
    %220 = vmatpush1.msra.mxu0 %v181
    %221 = vmatprep.subr.mxu0 0.0
    %222 = vmatpush1.msra.mxu0 %v180
    %223 = vmatprep.subr.mxu0 0.0
    %224 = vmatpush2.msra.mxu0 0.0
    %225 = vmatprep.subr.mxu0 0.0
    %226 = vmatpush2.msra.mxu0 0.0
    %227 = vmatprep.subr.mxu0 0.0
    %228 = vmatpush2.msra.mxu0 0.0
    %229 = vmatprep.subr.mxu0 0.0
    %230 = vmatpush2.msra.mxu0 0.0
    %231 = vmatprep.subr.mxu0 0.0
    %232 = vmatpush2.msra.mxu0 0.0
    %233 = vmatprep.subr.mxu0 0.0
    %234 = vmatpush2.msra.mxu0 0.0
    %235 = vmatprep.subr.mxu0 0.0
    %236 = vmatpush2.msra.mxu0 0.0
    %237 = vmatprep.subr.mxu0 0.0
    %238 = vmatpush2.msra.mxu0 0.0
    %239 = vmatprep.subr.mxu0 0.0
    %240 = vmatpush2.msra.mxu0 0.0
    %241 = vmatprep.subr.mxu0 0.0
    %242 = vmatpush2.msra.mxu0 0.0
    %243 = vmatprep.subr.mxu0 0.0
    %244 = vmatpush2.msra.mxu0 0.0
    %245 = vmatprep.subr.mxu0 0.0
    %246 = vmatpush2.msra.mxu0 0.0
    %247 = vmatprep.subr.mxu0 0.0
    %248 = vmatpush2.msra.mxu0 0.0
    %249 = vmatprep.subr.mxu0 0.0
    %250 = vmatpush2.msra.mxu0 0.0
    %251 = vmatprep.subr.mxu0 0.0
    %252 = vmatpush2.msra.mxu0 0.0
    %253 = vmatprep.subr.mxu0 0.0
    %254 = vmatpush2.msra.mxu0 0.0
    %255 = vmatprep.mubr.f32.mxu0 0.0
    %256 = vmatmul.mubr.f32.gmra.mxu0 %v107
    %v257 = vpop.f32.mrf.mxu0
    %v258 = vadd.f32 %v189, %v257
    %v259 = vpop.f32.mrf.mxu0
    %260 = vdwg.mxu0
    %261 = vst [vmem:[#allocation3] sm:$0xff] %v258
    %v262 = vld [vmem:[#allocation9] sm:$0xff]
    %v263 = vld [vmem:[#allocation9 + $0x8] sm:$0xff]
    %v264 = vld [vmem:[#allocation9 + $0x10] sm:$0xff]
    %v265 = vld [vmem:[#allocation9 + $0x18] sm:$0xff]
    %v266 = vld [vmem:[#allocation12] sm:$0xff]
    %v267 = vld [vmem:[#allocation12 + $0x8] sm:$0xff]
    %v268 = vld [vmem:[#allocation12 + $0x10] sm:$0xff]
    %v269 = vld [vmem:[#allocation12 + $0x18] sm:$0xff]
    loop: start=0, step=1, limit=8
    $region50: #{tpu_custom_call.1} parent=1 // loop_pre_header
      _
    $region51: #{tpu_custom_call.1} parent=1 // loop_header
      %s271 = sphi 0, %s275
      %p272 = scmp.ge.s32.totalorder %s271, 8
      %v276 = vphi 0.0, %v384
      %v277 = vphi 0.0, %v378
      %v278 = vphi 0.0, %v484
      %v279 = vphi 0.0, %v478
    $region52: #{tpu_custom_call.1} parent=1 // loop_header_branch
      %274 = sbr.rel (%p272) target = $region56
    $region53: #{tpu_custom_call.1} parent=1 // loop_body
      %s280 = ssub.s32 7, %s271
      %s281 = scalar_lea.vmem [#allocation2], %s271
      %v282 = vld [vmem:[%s281] sm:$0x1]
      %s283 = scalar_lea.vmem [#allocation3], %s280
      %v284 = vld [vmem:[%s283] sm:$0x1]
      %286 = vrot.lane.b32.xlu0 %v276, 32
      %v287 = vpop.permute.xlu0 %286
      %v288 = vsel %vm105, %v287, 0
      %290 = vmatprep.subr.mxu0 0.0
      %291 = vmatpush1.msra.mxu0 0.0
      %292 = vmatprep.subr.mxu0 0.0
      %293 = vmatpush1.msra.mxu0 0.0
      %294 = vmatprep.subr.mxu0 0.0
      %295 = vmatpush1.msra.mxu0 0.0
      %296 = vmatprep.subr.mxu0 0.0
      %297 = vmatpush1.msra.mxu0 0.0
      %298 = vmatprep.subr.mxu0 0.0
      %299 = vmatpush1.msra.mxu0 0.0
      %300 = vmatprep.subr.mxu0 0.0
      %301 = vmatpush1.msra.mxu0 0.0
      %302 = vmatprep.subr.mxu0 0.0
      %303 = vmatpush1.msra.mxu0 0.0
      %304 = vmatprep.subr.mxu0 0.0
      %305 = vmatpush1.msra.mxu0 0.0
      %306 = vmatprep.subr.mxu0 0.0
      %307 = vmatpush1.msra.mxu0 0.0
      %308 = vmatprep.subr.mxu0 0.0
      %309 = vmatpush1.msra.mxu0 0.0
      %310 = vmatprep.subr.mxu0 0.0
      %311 = vmatpush1.msra.mxu0 0.0
      %312 = vmatprep.subr.mxu0 0.0
      %313 = vmatpush1.msra.mxu0 0.0
      %314 = vmatprep.subr.mxu0 0.0
      %315 = vmatpush1.msra.mxu0 %v265
      %316 = vmatprep.subr.mxu0 0.0
      %317 = vmatpush1.msra.mxu0 %v264
      %318 = vmatprep.subr.mxu0 0.0
      %319 = vmatpush1.msra.mxu0 %v263
      %320 = vmatprep.subr.mxu0 0.0
      %321 = vmatpush1.msra.mxu0 %v262
      %322 = vmatprep.subr.mxu0 0.0
      %323 = vmatpush2.msra.mxu0 0.0
      %324 = vmatprep.subr.mxu0 0.0
      %325 = vmatpush2.msra.mxu0 0.0
      %326 = vmatprep.subr.mxu0 0.0
      %327 = vmatpush2.msra.mxu0 0.0
      %328 = vmatprep.subr.mxu0 0.0
      %329 = vmatpush2.msra.mxu0 0.0
      %330 = vmatprep.subr.mxu0 0.0
      %331 = vmatpush2.msra.mxu0 0.0
      %332 = vmatprep.subr.mxu0 0.0
      %333 = vmatpush2.msra.mxu0 0.0
      %334 = vmatprep.subr.mxu0 0.0
      %335 = vmatpush2.msra.mxu0 0.0
      %336 = vmatprep.subr.mxu0 0.0
      %337 = vmatpush2.msra.mxu0 0.0
      %338 = vmatprep.subr.mxu0 0.0
      %339 = vmatpush2.msra.mxu0 0.0
      %340 = vmatprep.subr.mxu0 0.0
      %341 = vmatpush2.msra.mxu0 0.0
      %342 = vmatprep.subr.mxu0 0.0
      %343 = vmatpush2.msra.mxu0 0.0
      %344 = vmatprep.subr.mxu0 0.0
      %345 = vmatpush2.msra.mxu0 0.0
      %346 = vmatprep.subr.mxu0 0.0
      %347 = vmatpush2.msra.mxu0 0.0
      %348 = vmatprep.subr.mxu0 0.0
      %349 = vmatpush2.msra.mxu0 0.0
      %350 = vmatprep.subr.mxu0 0.0
      %351 = vmatpush2.msra.mxu0 0.0
      %352 = vmatprep.subr.mxu0 0.0
      %353 = vmatpush2.msra.mxu0 0.0
      %354 = vmatprep.mubr.f32.mxu0 0.0
      %355 = vmatmul.mubr.f32.gmra.mxu0 %v288
      %v356 = vpop.f32.mrf.mxu0
      %v357 = vadd.f32 0.0, %v356
      %v358 = vpop.f32.mrf.mxu0
      %359 = vdwg.mxu0
      %v360 = vadd.f32 %v282, %v357
      %v361 = vxor.u32 %v360, 2147483648
      %v362 = vmul.f32 %v361, 1.442695
      %v363 = vpow.pop %v362
      %v364 = vadd.f32 %v363, 1.0
      %v365 = vrcp.pop %v364
      %v366 = vmul.f32 1.0, %v365
      %v367 = vtanh.pop %v360
      %v368 = vmul.f32 %v366, %v277
      %370 = vrot.lane.b32.xlu0 %v367, 64
      %v371 = vpop.permute.xlu0 %370
      %v373 = vmul.f32 %v366, %v371
      %375 = vrot.lane.b32.xlu0 %v373, 32
      %v376 = vpop.permute.xlu0 %375
      %v378 = vadd.f32 %v368, %v376
      %v379 = vtanh.pop %v378
      %381 = vrot.lane.b32.xlu0 %v379, 64
      %v382 = vpop.permute.xlu0 %381
      %v384 = vmul.f32 %v366, %v382
      %386 = vrot.lane.b32.xlu0 %v278, 32
      %v387 = vpop.permute.xlu0 %386
      %v388 = vsel %vm105, %v387, 0
      %390 = vmatprep.subr.mxu0 0.0
      %391 = vmatpush1.msra.mxu0 0.0
      %392 = vmatprep.subr.mxu0 0.0
      %393 = vmatpush1.msra.mxu0 0.0
      %394 = vmatprep.subr.mxu0 0.0
      %395 = vmatpush1.msra.mxu0 0.0
      %396 = vmatprep.subr.mxu0 0.0
      %397 = vmatpush1.msra.mxu0 0.0
      %398 = vmatprep.subr.mxu0 0.0
      %399 = vmatpush1.msra.mxu0 0.0
      %400 = vmatprep.subr.mxu0 0.0
      %401 = vmatpush1.msra.mxu0 0.0
      %402 = vmatprep.subr.mxu0 0.0
      %403 = vmatpush1.msra.mxu0 0.0
      %404 = vmatprep.subr.mxu0 0.0
      %405 = vmatpush1.msra.mxu0 0.0
      %406 = vmatprep.subr.mxu0 0.0
      %407 = vmatpush1.msra.mxu0 0.0
      %408 = vmatprep.subr.mxu0 0.0
      %409 = vmatpush1.msra.mxu0 0.0
      %410 = vmatprep.subr.mxu0 0.0
      %411 = vmatpush1.msra.mxu0 0.0
      %412 = vmatprep.subr.mxu0 0.0
      %413 = vmatpush1.msra.mxu0 0.0
      %414 = vmatprep.subr.mxu0 0.0
      %415 = vmatpush1.msra.mxu0 %v269
      %416 = vmatprep.subr.mxu0 0.0
      %417 = vmatpush1.msra.mxu0 %v268
      %418 = vmatprep.subr.mxu0 0.0
      %419 = vmatpush1.msra.mxu0 %v267
      %420 = vmatprep.subr.mxu0 0.0
      %421 = vmatpush1.msra.mxu0 %v266
      %422 = vmatprep.subr.mxu0 0.0
      %423 = vmatpush2.msra.mxu0 0.0
      %424 = vmatprep.subr.mxu0 0.0
      %425 = vmatpush2.msra.mxu0 0.0
      %426 = vmatprep.subr.mxu0 0.0
      %427 = vmatpush2.msra.mxu0 0.0
      %428 = vmatprep.subr.mxu0 0.0
      %429 = vmatpush2.msra.mxu0 0.0
      %430 = vmatprep.subr.mxu0 0.0
      %431 = vmatpush2.msra.mxu0 0.0
      %432 = vmatprep.subr.mxu0 0.0
      %433 = vmatpush2.msra.mxu0 0.0
      %434 = vmatprep.subr.mxu0 0.0
      %435 = vmatpush2.msra.mxu0 0.0
      %436 = vmatprep.subr.mxu0 0.0
      %437 = vmatpush2.msra.mxu0 0.0
      %438 = vmatprep.subr.mxu0 0.0
      %439 = vmatpush2.msra.mxu0 0.0
      %440 = vmatprep.subr.mxu0 0.0
      %441 = vmatpush2.msra.mxu0 0.0
      %442 = vmatprep.subr.mxu0 0.0
      %443 = vmatpush2.msra.mxu0 0.0
      %444 = vmatprep.subr.mxu0 0.0
      %445 = vmatpush2.msra.mxu0 0.0
      %446 = vmatprep.subr.mxu0 0.0
      %447 = vmatpush2.msra.mxu0 0.0
      %448 = vmatprep.subr.mxu0 0.0
      %449 = vmatpush2.msra.mxu0 0.0
      %450 = vmatprep.subr.mxu0 0.0
      %451 = vmatpush2.msra.mxu0 0.0
      %452 = vmatprep.subr.mxu0 0.0
      %453 = vmatpush2.msra.mxu0 0.0
      %454 = vmatprep.mubr.f32.mxu0 0.0
      %455 = vmatmul.mubr.f32.gmra.mxu0 %v388
      %v456 = vpop.f32.mrf.mxu0
      %v457 = vadd.f32 0.0, %v456
      %v458 = vpop.f32.mrf.mxu0
      %459 = vdwg.mxu0
      %v460 = vadd.f32 %v284, %v457
      %v461 = vxor.u32 %v460, 2147483648
      %v462 = vmul.f32 %v461, 1.442695
      %v463 = vpow.pop %v462
      %v464 = vadd.f32 %v463, 1.0
      %v465 = vrcp.pop %v464
      %v466 = vmul.f32 1.0, %v465
      %v467 = vtanh.pop %v460
      %v468 = vmul.f32 %v466, %v279
      %470 = vrot.lane.b32.xlu0 %v467, 64
      %v471 = vpop.permute.xlu0 %470
      %v473 = vmul.f32 %v466, %v471
      %475 = vrot.lane.b32.xlu0 %v473, 32
      %v476 = vpop.permute.xlu0 %475
      %v478 = vadd.f32 %v468, %v476
      %v479 = vtanh.pop %v478
      %481 = vrot.lane.b32.xlu0 %v479, 64
      %v482 = vpop.permute.xlu0 %481
      %v484 = vmul.f32 %v466, %v482
      %486 = vrot.lane.b32.xlu0 %v384, 32
      %v487 = vpop.permute.xlu0 %486
      %s489 = scalar_lea.vmem [#allocation13], %s271
      %vm490 = vcmask 253952
      %491 = vst.msk [vmem:[%s489] sm:$0x1] %vm490, %v487
      %493 = vrot.lane.b32.xlu0 %v484, 64
      %v494 = vpop.permute.xlu0 %493
      %s496 = scalar_lea.vmem [#allocation13], %s280
      %vm497 = vcmask 516352
      %498 = vst.msk [vmem:[%s496] sm:$0x1] %vm497, %v494
    $region54: #{tpu_custom_call.1} parent=1 // loop_footer
      %s275 = sadd.s32 1, %s271
    $region55: #{tpu_custom_call.1} parent=1 // loop_footer_branch
      %270 = sbr.rel target = $region51
    $region56: #{tpu_custom_call.1} parent=1 // loop_exit
      _
    // Predicated region
    $region57: #{tpu_custom_call.1} parent=1 // pred_check
      _
    $region58: #{tpu_custom_call.1} parent=1 // pred_check_branch
      %500 = sbr.rel (0) target = $region60
    $region59: #{tpu_custom_call.1} parent=1 // pred_region
      %s502 = ssub.s32 128, 128
      %503 = vsyncadd [#allocation6], %s502
      %s505 = sshll.u32 [#allocation13], 4
      %s506 = int_to_ptr.vmem [resolvable:$true] %s505
      %508 = dma.vmem_to_hbm [thread:$0]  %s506, 128, %s7, [#allocation6]
    $region60: #{tpu_custom_call.1} parent=1 // pred_fallthru
      _
    // Predicated region
    $region61: #{tpu_custom_call.1} parent=1 // pred_check
      _
    $region62: #{tpu_custom_call.1} parent=1 // pred_check_branch
      %510 = sbr.rel (0) target = $region64
    $region63: #{tpu_custom_call.1} parent=1 // pred_region
      %511 = dma.done [#allocation6], 128
    $region64: #{tpu_custom_call.1} parent=1 // pred_fallthru
      _
    %512 = vsyncpa [#allocation5], 1
    %513 = vsyncpa [#allocation8], 1
    %514 = vsyncpa [#allocation11], 1
    %515 = vsyncpa [#allocation6], 1

</llo_original>
